<compile_context>
chip_gen: v7x
topology: tpu7x:2x2x1
jax: 0.10.0
libtpu: 0.0.40
codegen_flags: <defaults>
</compile_context>

<pallas_src>
import jax
import jax.numpy as jnp
from jax.experimental import pallas as pl
from jax.experimental.pallas import tpu as pltpu


def _qnn_kernel(xT_ref, w1_ref, b1_ref, w2_ref, b2_ref, w3_ref, b3_ref, o_ref):
    # xT: [S, tb]; W_i: [out_i, in_i] (PyTorch layout); b_i: [out_i, 1]; o: [A, tb].
    h1 = jnp.dot(w1_ref[...], xT_ref[...], preferred_element_type=jnp.float32)
    h1 = jnp.maximum(h1 + b1_ref[...], 0.0)                                  # [F1, tb] f32
    h2 = jnp.dot(w2_ref[...], h1.astype(w2_ref.dtype),
                 preferred_element_type=jnp.float32)
    h2 = jnp.maximum(h2 + b2_ref[...], 0.0)                                  # [F2, tb] f32
    out = jnp.dot(w3_ref[...], h2.astype(w3_ref.dtype),
                  preferred_element_type=jnp.float32)
    o_ref[...] = (out + b3_ref[...]).astype(o_ref.dtype)                     # [A, tb]


def _round_up(x, m):
    return (x + m - 1) // m * m


def _ceil_div(a, b):
    return -(-a // b)


def qnn_forward(state, params, *, block_b=8192, cast_to_bf16=True):
    """Fused forward pass of the 3-layer MLP (batch-on-lanes layout).

    state:  [B, state_size] float32
    params: dict with PyTorch-layout weights/biases:
            w1 [F1,S], b1 [F1,1], w2 [F2,F1], b2 [F2,1], w3 [A,F2], b3 [A,1]
    """
    w1, b1 = params["w1"], params["b1"]
    w2, b2 = params["w2"], params["b2"]
    w3, b3 = params["w3"], params["b3"]

    B, S = state.shape
    F1 = w1.shape[0]
    F2 = w2.shape[0]
    A = w3.shape[0]

    out_dtype = state.dtype
    op_dtype = jnp.bfloat16 if cast_to_bf16 else state.dtype

    # --- Batch tiling: lane-aligned (multiple of 128), single step when possible,
    # --- and an even step count when multi-step (keeps both v7x TensorCores busy).
    b_lane = _round_up(B, 128)
    tb = min(_round_up(int(block_b), 128), b_lane)
    n_blocks = _ceil_div(b_lane, tb)
    if n_blocks > 1 and n_blocks % 2 == 1:
        n_blocks += 1
    tb = _round_up(_ceil_div(b_lane, n_blocks), 128)
    b_pad = tb * n_blocks

    # Transpose to batch-on-lanes and pad the batch (lane) axis.
    xT = jnp.pad(state.T.astype(op_dtype), ((0, 0), (0, b_pad - B)))

    # Resident operands: weights in the streaming dtype, biases kept f32 (added to f32 acc).
    w1c, w2c, w3c = (w.astype(op_dtype) for w in (w1, w2, w3))
    b1c, b2c, b3c = (b.astype(jnp.float32) for b in (b1, b2, b3))

    # Full-array blocks with constant index maps -> loaded once, VMEM-resident across steps.
    def resident(arr):
        return pl.BlockSpec(arr.shape, lambda i: (0, 0))

    flops = 2 * b_pad * (S * F1 + F1 * F2 + F2 * A)
    bytes_in = sum(int(a.size) * a.dtype.itemsize
                   for a in (xT, w1c, b1c, w2c, b2c, w3c, b3c))
    bytes_out = int(b_pad) * A * jnp.dtype(out_dtype).itemsize
    cost = pl.CostEstimate(flops=int(flops), transcendentals=0,
                           bytes_accessed=int(bytes_in + bytes_out))

    outT = pl.pallas_call(
        _qnn_kernel,
        out_shape=jax.ShapeDtypeStruct((A, b_pad), out_dtype),
        grid_spec=pl.GridSpec(
            grid=(n_blocks,),
            in_specs=[
                pl.BlockSpec((S, tb), lambda i: (0, i)),   # streamed x^T tile (lane-dense)
                resident(w1c), resident(b1c),
                resident(w2c), resident(b2c),
                resident(w3c), resident(b3c),
            ],
            out_specs=pl.BlockSpec((A, tb), lambda i: (0, i)),
        ),
        compiler_params=pltpu.CompilerParams(
            dimension_semantics=("parallel",),      # independent batch tiles -> v7x 2-TC shard
            vmem_limit_bytes=32 * 1024 * 1024,      # insurance for v5e's 16 MiB scoped default
        ),
        cost_estimate=cost,
    )(xT, w1c, b1c, w2c, b2c, w3c, b3c)

    return outT[:, :B].T


def init_params(key, state_size, action_size, fc1_units, fc2_units):
    """Deterministic init mimicking nn.Linear's uniform(-1/sqrt(fan_in), 1/sqrt(fan_in)).

    Weights are stored in PyTorch [out, in] layout, biases as [out, 1] columns.
    """
    ks = jax.random.split(key, 6)

    def linear(kw, kb, fan_in, fan_out):
        bound = 1.0 / jnp.sqrt(jnp.float32(fan_in))
        w = jax.random.uniform(kw, (fan_out, fan_in), jnp.float32, -bound, bound)
        b = jax.random.uniform(kb, (fan_out, 1), jnp.float32, -bound, bound)
        return w, b

    w1, b1 = linear(ks[0], ks[1], state_size, fc1_units)
    w2, b2 = linear(ks[2], ks[3], fc1_units, fc2_units)
    w3, b3 = linear(ks[4], ks[5], fc2_units, action_size)
    return {"w1": w1, "b1": b1, "w2": w2, "b2": b2, "w3": w3, "b3": b3}


def qnn_reference(state, params, op_dtype):
    """Plain-JAX reference using the natural row-major form x @ W^T + b."""
    def lin(x, w, b):
        return jnp.dot(x.astype(op_dtype), w.astype(op_dtype).T,
                       preferred_element_type=jnp.float32) + b.T
    h1 = jnp.maximum(lin(state, params["w1"], params["b1"]), 0.0)
    h2 = jnp.maximum(lin(h1, params["w2"], params["b2"]), 0.0)
    return lin(h2, params["w3"], params["b3"])


if __name__ == "__main__":
    # Config consistent with the module's constructor:
    #   QNN(state_size=16, action_size=8, seed=0, config={'fc1_units': 32, 'fc2_units': 32})
    state_size, action_size = 16, 8
    fc1_units, fc2_units = 32, 32

    key = jax.random.PRNGKey(0)
    k_params, k_x = jax.random.split(key)
    params = init_params(k_params, state_size, action_size, fc1_units, fc2_units)

    # --- 1) Multi-step path (2 even steps after lane-padding 200 -> 256), bf16 streaming.
    batch = 200
    x = jax.random.normal(k_x, (batch, state_size), jnp.float32)
    out_bf16 = jax.block_until_ready(qnn_forward(x, params, block_b=128, cast_to_bf16=True))
    ref_bf16 = qnn_reference(x, params, jnp.bfloat16)
    assert out_bf16.shape == (batch, action_size)
    assert jnp.allclose(out_bf16, ref_bf16, atol=5e-4, rtol=5e-4)

    # --- 2) Bit-exact f32 path, same batch.
    out_f32 = jax.block_until_ready(qnn_forward(x, params, block_b=128, cast_to_bf16=False))
    ref_f32 = qnn_reference(x, params, jnp.float32)
    assert jnp.allclose(out_f32, ref_f32, atol=1e-4, rtol=1e-4)

    # --- 3) Single-step path (batch padded to one 128-lane tile, grid=(1,)).
    x_small = x[:40]
    out_small = jax.block_until_ready(qnn_forward(x_small, params, cast_to_bf16=True))
    assert out_small.shape == (40, action_size)
    assert jnp.allclose(out_small, ref_bf16[:40], atol=5e-4, rtol=5e-4)

    # --- 4) Odd step count gets bumped to even (300 rows @ 128-row tiles -> 4 steps).
    x_odd = jax.random.normal(jax.random.PRNGKey(1), (300, state_size), jnp.float32)
    out_odd = jax.block_until_ready(qnn_forward(x_odd, params, block_b=128, cast_to_bf16=True))
    ref_odd = qnn_reference(x_odd, params, jnp.bfloat16)
    assert jnp.allclose(out_odd, ref_odd, atol=5e-4, rtol=5e-4)

    print("KERNEL_OK")
</pallas_src>

<mosaic_0001>
module attributes {stable_mosaic.version = 11 : i64} {
  func.func @_qnn_kernel(%arg0: i32, %arg1: memref<16x128xbf16, #tpu.memory_space<vmem>>, %arg2: memref<32x16xbf16, #tpu.memory_space<vmem>>, %arg3: memref<32x1xf32, #tpu.memory_space<vmem>>, %arg4: memref<32x32xbf16, #tpu.memory_space<vmem>>, %arg5: memref<32x1xf32, #tpu.memory_space<vmem>>, %arg6: memref<8x32xbf16, #tpu.memory_space<vmem>>, %arg7: memref<8x1xf32, #tpu.memory_space<vmem>>, %arg8: memref<8x128xf32, #tpu.memory_space<vmem>>) attributes {dimension_semantics = [#tpu.dimension_semantics<parallel>], iteration_bounds = array<i64: 2>, scalar_prefetch = 0 : i64, scratch_operands = 0 : i64, tpu.core_type = #tpu.core_type<tc>, window_params = [{transform_indices = @transform_0, window_bounds = array<i64: 16, 128>}, {pipeline_mode = #tpu.pipeline_mode<synchronous>, transform_indices = @transform_1, window_bounds = array<i64: 32, 16>}, {pipeline_mode = #tpu.pipeline_mode<synchronous>, transform_indices = @transform_2, window_bounds = array<i64: 32, 1>}, {pipeline_mode = #tpu.pipeline_mode<synchronous>, transform_indices = @transform_3, window_bounds = array<i64: 32, 32>}, {pipeline_mode = #tpu.pipeline_mode<synchronous>, transform_indices = @transform_4, window_bounds = array<i64: 32, 1>}, {pipeline_mode = #tpu.pipeline_mode<synchronous>, transform_indices = @transform_5, window_bounds = array<i64: 8, 32>}, {pipeline_mode = #tpu.pipeline_mode<synchronous>, transform_indices = @transform_6, window_bounds = array<i64: 8, 1>}, {transform_indices = @transform_7, window_bounds = array<i64: 8, 128>}]} {
    %c0 = arith.constant 0 : index
    %c0_0 = arith.constant 0 : index
    %0 = vector.load %arg2[%c0, %c0_0] : memref<32x16xbf16, #tpu.memory_space<vmem>>, vector<32x16xbf16>
    %c0_1 = arith.constant 0 : index
    %c0_2 = arith.constant 0 : index
    %1 = vector.load %arg1[%c0_1, %c0_2] : memref<16x128xbf16, #tpu.memory_space<vmem>>, vector<16x128xbf16>
    %cst = arith.constant dense<0.000000e+00> : vector<32x128xf32>
    %2 = tpu.matmul %0, %1, %cst {dimension_numbers = #tpu.dot_dimension_numbers<[1], [0], [0], [1], [0, 0, 1, 1], [], []>} : vector<32x16xbf16>, vector<16x128xbf16>, vector<32x128xf32> -> vector<32x128xf32>
    %c0_3 = arith.constant 0 : index
    %c0_4 = arith.constant 0 : index
    %3 = vector.load %arg3[%c0_3, %c0_4] : memref<32x1xf32, #tpu.memory_space<vmem>>, vector<32x1xf32>
    %4 = vector.broadcast %3 : vector<32x1xf32> to vector<32x128xf32>
    %5 = arith.addf %2, %4 : vector<32x128xf32>
    %cst_5 = arith.constant 0.000000e+00 : f32
    %6 = vector.broadcast %cst_5 : f32 to vector<32x128xf32>
    %7 = arith.maximumf %5, %6 : vector<32x128xf32>
    %c0_6 = arith.constant 0 : index
    %c0_7 = arith.constant 0 : index
    %8 = vector.load %arg4[%c0_6, %c0_7] : memref<32x32xbf16, #tpu.memory_space<vmem>>, vector<32x32xbf16>
    %9 = arith.truncf %7 : vector<32x128xf32> to vector<32x128xbf16>
    %cst_8 = arith.constant dense<0.000000e+00> : vector<32x128xf32>
    %10 = tpu.matmul %8, %9, %cst_8 {dimension_numbers = #tpu.dot_dimension_numbers<[1], [0], [0], [1], [0, 0, 1, 1], [], []>} : vector<32x32xbf16>, vector<32x128xbf16>, vector<32x128xf32> -> vector<32x128xf32>
    %c0_9 = arith.constant 0 : index
    %c0_10 = arith.constant 0 : index
    %11 = vector.load %arg5[%c0_9, %c0_10] : memref<32x1xf32, #tpu.memory_space<vmem>>, vector<32x1xf32>
    %12 = vector.broadcast %11 : vector<32x1xf32> to vector<32x128xf32>
    %13 = arith.addf %10, %12 : vector<32x128xf32>
    %cst_11 = arith.constant 0.000000e+00 : f32
    %14 = vector.broadcast %cst_11 : f32 to vector<32x128xf32>
    %15 = arith.maximumf %13, %14 : vector<32x128xf32>
    %c0_12 = arith.constant 0 : index
    %c0_13 = arith.constant 0 : index
    %16 = vector.load %arg6[%c0_12, %c0_13] : memref<8x32xbf16, #tpu.memory_space<vmem>>, vector<8x32xbf16>
    %17 = arith.truncf %15 : vector<32x128xf32> to vector<32x128xbf16>
    %cst_14 = arith.constant dense<0.000000e+00> : vector<8x128xf32>
    %18 = tpu.matmul %16, %17, %cst_14 {dimension_numbers = #tpu.dot_dimension_numbers<[1], [0], [0], [1], [0, 0, 1, 1], [], []>} : vector<8x32xbf16>, vector<32x128xbf16>, vector<8x128xf32> -> vector<8x128xf32>
    %c0_15 = arith.constant 0 : index
    %c0_16 = arith.constant 0 : index
    %19 = vector.load %arg7[%c0_15, %c0_16] : memref<8x1xf32, #tpu.memory_space<vmem>>, vector<8x1xf32>
    %20 = vector.broadcast %19 : vector<8x1xf32> to vector<8x128xf32>
    %21 = arith.addf %18, %20 : vector<8x128xf32>
    %c0_17 = arith.constant 0 : index
    %c0_18 = arith.constant 0 : index
    %22 = vector.load %arg8[%c0_17, %c0_18] : memref<8x128xf32, #tpu.memory_space<vmem>>, vector<8x128xf32>
    tpu.vector_store %arg8[%c0_17, %c0_18], %21 {strides = array<i32>} : memref<8x128xf32, #tpu.memory_space<vmem>>, vector<8x128xf32>,
    return
  }
  func.func @transform_0(%arg0: i32) -> (i32, i32) {
    %c0_i32 = arith.constant 0 : i32
    %c0_i32_0 = arith.constant 0 : i32
    return %c0_i32, %arg0 : i32, i32
  }
  func.func @transform_1(%arg0: i32) -> (i32, i32) {
    %c0_i32 = arith.constant 0 : i32
    %c0_i32_0 = arith.constant 0 : i32
    %c0_i32_1 = arith.constant 0 : i32
    return %c0_i32, %c0_i32_0 : i32, i32
  }
  func.func @transform_2(%arg0: i32) -> (i32, i32) {
    %c0_i32 = arith.constant 0 : i32
    %c0_i32_0 = arith.constant 0 : i32
    %c0_i32_1 = arith.constant 0 : i32
    return %c0_i32, %c0_i32_0 : i32, i32
  }
  func.func @transform_3(%arg0: i32) -> (i32, i32) {
    %c0_i32 = arith.constant 0 : i32
    %c0_i32_0 = arith.constant 0 : i32
    %c0_i32_1 = arith.constant 0 : i32
    return %c0_i32, %c0_i32_0 : i32, i32
  }
  func.func @transform_4(%arg0: i32) -> (i32, i32) {
    %c0_i32 = arith.constant 0 : i32
    %c0_i32_0 = arith.constant 0 : i32
    %c0_i32_1 = arith.constant 0 : i32
    return %c0_i32, %c0_i32_0 : i32, i32
  }
  func.func @transform_5(%arg0: i32) -> (i32, i32) {
    %c0_i32 = arith.constant 0 : i32
    %c0_i32_0 = arith.constant 0 : i32
    %c0_i32_1 = arith.constant 0 : i32
    return %c0_i32, %c0_i32_0 : i32, i32
  }
  func.func @transform_6(%arg0: i32) -> (i32, i32) {
    %c0_i32 = arith.constant 0 : i32
    %c0_i32_0 = arith.constant 0 : i32
    %c0_i32_1 = arith.constant 0 : i32
    return %c0_i32, %c0_i32_0 : i32, i32
  }
  func.func @transform_7(%arg0: i32) -> (i32, i32) {
    %c0_i32 = arith.constant 0 : i32
    %c0_i32_0 = arith.constant 0 : i32
    return %c0_i32, %arg0 : i32, i32
  }
}

</mosaic_0001>

<llo_original>
// kernel: tpu_custom_call.1
$region0: #{tpu_custom_call.1}
  #allocation0 [shape = 'u32[]', space=smem, size = 0x4, offset = 0x4, fixed_abs, tag = 'smem constant byte address 0x4 - core index']
  #allocation1 [shape = 'u32[144,128]{1,0:T(1,128)}', space=vmem, size = 0x12000, scoped, tag = 'internal scratch']
  %s0 = inlined_call_operand.vmem [shape: bf16[16,256], index: 0, kind: input, shape index: {}]
  %s1 = inlined_call_operand.vmem [shape: bf16[32,16], index: 1, kind: input, shape index: {}]
  %s2 = inlined_call_operand.vmem [shape: f32[32,1], index: 2, kind: input, shape index: {}]
  %s3 = inlined_call_operand.vmem [shape: bf16[32,32], index: 3, kind: input, shape index: {}]
  %s4 = inlined_call_operand.vmem [shape: f32[32,1], index: 4, kind: input, shape index: {}]
  %s5 = inlined_call_operand.vmem [shape: bf16[8,32], index: 5, kind: input, shape index: {}]
  %s6 = inlined_call_operand.vmem [shape: f32[8,1], index: 6, kind: input, shape index: {}]
  %s7 = inlined_call_operand.hbm [shape: f32[8,256], index: 7, kind: output, shape index: {}]
  %s8 = sld [smem:[#allocation0]]
  $region102: #{tpu_custom_call.1} parent=0
    _
  %s10 = ssub.s32 1, %s8
  %s11 = scalar_select 0, %s10, %s8
  $region1: #{tpu_custom_call.1} parent=0
    #allocation2 [shape = 'u8[8192]{0}', space=vmem, size = 0x2000, scoped, tag = 'input window, operand 0']
    #allocation3 [shape = 'u8[8192]{0}', space=vmem, size = 0x2000, scoped, tag = 'output window, operand 0']
    #allocation4 [shape = 's32[2]{0}', space=sflag, size = 0x8, scoped, tag = 'scoped memory for tpu_custom_call.1']
    %12 = vsyncpa [#allocation4], 0
    %s13 = scalar_lea.sflag [#allocation4], 1
    %14 = vsyncpa %s13, 0
    loop: start=0, step=1, limit=4
    $region2: #{tpu_custom_call.1} parent=1 // loop_pre_header
      _
    $region3: #{tpu_custom_call.1} parent=1 // loop_header
      %s16 = sphi 0, %s20
      %p17 = scmp.ge.s32.totalorder %s16, 4
      %s26 = sphi 0, %s28
      %s29 = sphi 0, %s26
      %s30 = sphi 0, %s29
      %s46 = sphi 0, %s30
      %s50 = sphi 0, %s50
      %s52 = sphi 0, %s50
      %s53 = sphi 0, %s52
      %s67 = sphi 0, %s53
      %s71 = sphi 0, %s71
      %s73 = sphi 0, %s71
      %s74 = sphi 0, %s73
      %s88 = sphi 0, %s74
      %s92 = sphi 0, %s92
      %s94 = sphi 0, %s92
      %s95 = sphi 0, %s94
      %s109 = sphi 0, %s95
      %s113 = sphi 0, %s113
      %s115 = sphi 0, %s113
      %s116 = sphi 0, %s115
      %s130 = sphi 0, %s116
      %s134 = sphi 0, %s134
      %s136 = sphi 0, %s134
      %s137 = sphi 0, %s136
      %s151 = sphi 0, %s137
      %s155 = sphi 0, %s155
      %s157 = sphi 0, %s155
      %s158 = sphi 0, %s157
      %s172 = sphi 0, %s158
      %s178 = sphi 0, %s180
      %s181 = sphi 0, %s178
      %s182 = sphi 0, %s181
      %s198 = sphi 0, %s182
    $region4: #{tpu_custom_call.1} parent=1 // loop_header_branch
      %19 = sbr.rel (%p17) target = $region8
    $region5: #{tpu_custom_call.1} parent=1 // loop_body
      %s21 = ssub.s32 %s16, 1
      %s22 = ssub.s32 %s16, 2
      %s23 = sadd.s32 %s16, 1
      %s24 = ssub.s32 %s16, %s23
      %p25 = scmp.eq.s32.totalorder %s24, 0
      %s27 = sadd.s32 %s26, 1
      %s28 = scalar_select %p25, %s26, %s27
      %p31 = pneg %p25
      %p32 = scmp.eq.s32.totalorder %s16, 1
      %p33 = por %p31, %p32
      %p34 = scmp.ne.s32.totalorder %s26, %s29
      %p35 = scmp.eq.s32.totalorder %s16, 0
      %p36 = por %p34, %p35
      %p37 = scmp.ne.s32.totalorder %s26, %s29
      %p38 = scmp.eq.s32.totalorder %s21, 1
      %p39 = por %p37, %p38
      %p40 = scmp.ne.s32.totalorder %s29, %s30
      %p41 = scmp.eq.s32.totalorder %s21, 0
      %p42 = por %p40, %p41
      %p43 = scmp.ne.s32.totalorder %s29, %s30
      %p44 = scmp.eq.s32.totalorder %s22, 1
      %p45 = por %p43, %p44
      %p47 = scmp.ne.s32.totalorder %s30, %s46
      %p48 = scmp.eq.s32.totalorder %s22, 0
      %p49 = por %p47, %p48
      %s51 = sadd.s32 %s50, 1
      %p54 = scmp.eq.s32.totalorder %s16, 1
      %p55 = scmp.ne.s32.totalorder %s50, %s52
      %p56 = scmp.eq.s32.totalorder %s16, 0
      %p57 = por %p55, %p56
      %p58 = scmp.ne.s32.totalorder %s50, %s52
      %p59 = scmp.eq.s32.totalorder %s21, 1
      %p60 = por %p58, %p59
      %p61 = scmp.ne.s32.totalorder %s52, %s53
      %p62 = scmp.eq.s32.totalorder %s21, 0
      %p63 = por %p61, %p62
      %p64 = scmp.ne.s32.totalorder %s52, %s53
      %p65 = scmp.eq.s32.totalorder %s22, 1
      %p66 = por %p64, %p65
      %p68 = scmp.ne.s32.totalorder %s53, %s67
      %p69 = scmp.eq.s32.totalorder %s22, 0
      %p70 = por %p68, %p69
      %s72 = sadd.s32 %s71, 1
      %p75 = scmp.eq.s32.totalorder %s16, 1
      %p76 = scmp.ne.s32.totalorder %s71, %s73
      %p77 = scmp.eq.s32.totalorder %s16, 0
      %p78 = por %p76, %p77
      %p79 = scmp.ne.s32.totalorder %s71, %s73
      %p80 = scmp.eq.s32.totalorder %s21, 1
      %p81 = por %p79, %p80
      %p82 = scmp.ne.s32.totalorder %s73, %s74
      %p83 = scmp.eq.s32.totalorder %s21, 0
      %p84 = por %p82, %p83
      %p85 = scmp.ne.s32.totalorder %s73, %s74
      %p86 = scmp.eq.s32.totalorder %s22, 1
      %p87 = por %p85, %p86
      %p89 = scmp.ne.s32.totalorder %s74, %s88
      %p90 = scmp.eq.s32.totalorder %s22, 0
      %p91 = por %p89, %p90
      %s93 = sadd.s32 %s92, 1
      %p96 = scmp.eq.s32.totalorder %s16, 1
      %p97 = scmp.ne.s32.totalorder %s92, %s94
      %p98 = scmp.eq.s32.totalorder %s16, 0
      %p99 = por %p97, %p98
      %p100 = scmp.ne.s32.totalorder %s92, %s94
      %p101 = scmp.eq.s32.totalorder %s21, 1
      %p102 = por %p100, %p101
      %p103 = scmp.ne.s32.totalorder %s94, %s95
      %p104 = scmp.eq.s32.totalorder %s21, 0
      %p105 = por %p103, %p104
      %p106 = scmp.ne.s32.totalorder %s94, %s95
      %p107 = scmp.eq.s32.totalorder %s22, 1
      %p108 = por %p106, %p107
      %p110 = scmp.ne.s32.totalorder %s95, %s109
      %p111 = scmp.eq.s32.totalorder %s22, 0
      %p112 = por %p110, %p111
      %s114 = sadd.s32 %s113, 1
      %p117 = scmp.eq.s32.totalorder %s16, 1
      %p118 = scmp.ne.s32.totalorder %s113, %s115
      %p119 = scmp.eq.s32.totalorder %s16, 0
      %p120 = por %p118, %p119
      %p121 = scmp.ne.s32.totalorder %s113, %s115
      %p122 = scmp.eq.s32.totalorder %s21, 1
      %p123 = por %p121, %p122
      %p124 = scmp.ne.s32.totalorder %s115, %s116
      %p125 = scmp.eq.s32.totalorder %s21, 0
      %p126 = por %p124, %p125
      %p127 = scmp.ne.s32.totalorder %s115, %s116
      %p128 = scmp.eq.s32.totalorder %s22, 1
      %p129 = por %p127, %p128
      %p131 = scmp.ne.s32.totalorder %s116, %s130
      %p132 = scmp.eq.s32.totalorder %s22, 0
      %p133 = por %p131, %p132
      %s135 = sadd.s32 %s134, 1
      %p138 = scmp.eq.s32.totalorder %s16, 1
      %p139 = scmp.ne.s32.totalorder %s134, %s136
      %p140 = scmp.eq.s32.totalorder %s16, 0
      %p141 = por %p139, %p140
      %p142 = scmp.ne.s32.totalorder %s134, %s136
      %p143 = scmp.eq.s32.totalorder %s21, 1
      %p144 = por %p142, %p143
      %p145 = scmp.ne.s32.totalorder %s136, %s137
      %p146 = scmp.eq.s32.totalorder %s21, 0
      %p147 = por %p145, %p146
      %p148 = scmp.ne.s32.totalorder %s136, %s137
      %p149 = scmp.eq.s32.totalorder %s22, 1
      %p150 = por %p148, %p149
      %p152 = scmp.ne.s32.totalorder %s137, %s151
      %p153 = scmp.eq.s32.totalorder %s22, 0
      %p154 = por %p152, %p153
      %s156 = sadd.s32 %s155, 1
      %p159 = scmp.eq.s32.totalorder %s16, 1
      %p160 = scmp.ne.s32.totalorder %s155, %s157
      %p161 = scmp.eq.s32.totalorder %s16, 0
      %p162 = por %p160, %p161
      %p163 = scmp.ne.s32.totalorder %s155, %s157
      %p164 = scmp.eq.s32.totalorder %s21, 1
      %p165 = por %p163, %p164
      %p166 = scmp.ne.s32.totalorder %s157, %s158
      %p167 = scmp.eq.s32.totalorder %s21, 0
      %p168 = por %p166, %p167
      %p169 = scmp.ne.s32.totalorder %s157, %s158
      %p170 = scmp.eq.s32.totalorder %s22, 1
      %p171 = por %p169, %p170
      %p173 = scmp.ne.s32.totalorder %s158, %s172
      %p174 = scmp.eq.s32.totalorder %s22, 0
      %p175 = por %p173, %p174
      %s176 = ssub.s32 %s16, %s23
      %p177 = scmp.eq.s32.totalorder %s176, 0
      %s179 = sadd.s32 %s178, 1
      %s180 = scalar_select %p177, %s178, %s179
      %p183 = pneg %p177
      %p184 = scmp.eq.s32.totalorder %s16, 1
      %p185 = por %p183, %p184
      %p186 = scmp.ne.s32.totalorder %s178, %s181
      %p187 = scmp.eq.s32.totalorder %s16, 0
      %p188 = por %p186, %p187
      %p189 = scmp.ne.s32.totalorder %s178, %s181
      %p190 = scmp.eq.s32.totalorder %s21, 1
      %p191 = por %p189, %p190
      %p192 = scmp.ne.s32.totalorder %s181, %s182
      %p193 = scmp.eq.s32.totalorder %s21, 0
      %p194 = por %p192, %p193
      %p195 = scmp.ne.s32.totalorder %s181, %s182
      %p196 = scmp.eq.s32.totalorder %s22, 1
      %p197 = por %p195, %p196
      %p199 = scmp.ne.s32.totalorder %s182, %s198
      %p200 = scmp.eq.s32.totalorder %s22, 0
      %p201 = por %p199, %p200
      %p202 = scmp.le.s32.totalorder 1, %s16
      %p203 = scmp.lt.s32.totalorder %s16, 3
      %p204 = pnand %p202, %p203
      %p205 = pneg %p204
      // Predicated region
      $region9: #{tpu_custom_call.1} parent=5 // pred_check
        _
      $region10: #{tpu_custom_call.1} parent=5 // pred_check_branch
        %207 = sbr.rel (%p204) target = $region12
      $region11: #{tpu_custom_call.1} parent=5 // pred_region
        %s208 = ssub.s32 %s16, 1
        // Predicated region
        $region13: #{tpu_custom_call.1} parent=11 // pred_check
          %p209 = pneg %p63
        $region14: #{tpu_custom_call.1} parent=11 // pred_check_branch
          %211 = sbr.rel (%p209) target = $region16
        $region15: #{tpu_custom_call.1} parent=11 // pred_region
          _
        $region16: #{tpu_custom_call.1} parent=11 // pred_fallthru
          _
        // Predicated region
        $region17: #{tpu_custom_call.1} parent=11 // pred_check
          %p212 = pneg %p84
        $region18: #{tpu_custom_call.1} parent=11 // pred_check_branch
          %214 = sbr.rel (%p212) target = $region20
        $region19: #{tpu_custom_call.1} parent=11 // pred_region
          _
        $region20: #{tpu_custom_call.1} parent=11 // pred_fallthru
          _
        // Predicated region
        $region21: #{tpu_custom_call.1} parent=11 // pred_check
          %p215 = pneg %p105
        $region22: #{tpu_custom_call.1} parent=11 // pred_check_branch
          %217 = sbr.rel (%p215) target = $region24
        $region23: #{tpu_custom_call.1} parent=11 // pred_region
          _
        $region24: #{tpu_custom_call.1} parent=11 // pred_fallthru
          _
        // Predicated region
        $region25: #{tpu_custom_call.1} parent=11 // pred_check
          %p218 = pneg %p126
        $region26: #{tpu_custom_call.1} parent=11 // pred_check_branch
          %220 = sbr.rel (%p218) target = $region28
        $region27: #{tpu_custom_call.1} parent=11 // pred_region
          _
        $region28: #{tpu_custom_call.1} parent=11 // pred_fallthru
          _
        // Predicated region
        $region29: #{tpu_custom_call.1} parent=11 // pred_check
          %p221 = pneg %p147
        $region30: #{tpu_custom_call.1} parent=11 // pred_check_branch
          %223 = sbr.rel (%p221) target = $region32
        $region31: #{tpu_custom_call.1} parent=11 // pred_region
          _
        $region32: #{tpu_custom_call.1} parent=11 // pred_fallthru
          _
        // Predicated region
        $region33: #{tpu_custom_call.1} parent=11 // pred_check
          %p224 = pneg %p168
        $region34: #{tpu_custom_call.1} parent=11 // pred_check_branch
          %226 = sbr.rel (%p224) target = $region36
        $region35: #{tpu_custom_call.1} parent=11 // pred_region
          _
        $region36: #{tpu_custom_call.1} parent=11 // pred_fallthru
          _
      $region12: #{tpu_custom_call.1} parent=5 // pred_fallthru
        _
      %p227 = scmp.lt.s32.totalorder %s16, 2
      // Predicated region
      $region37: #{tpu_custom_call.1} parent=5 // pred_check
        %p228 = pneg %p227
      $region38: #{tpu_custom_call.1} parent=5 // pred_check_branch
        %230 = sbr.rel (%p228) target = $region40
      $region39: #{tpu_custom_call.1} parent=5 // pred_region
        // Predicated region
        $region41: #{tpu_custom_call.1} parent=39 // pred_check
          %p231 = pneg %p36
        $region42: #{tpu_custom_call.1} parent=39 // pred_check_branch
          %233 = sbr.rel (%p231) target = $region44
        $region43: #{tpu_custom_call.1} parent=39 // pred_region
          %s234 = sand.u32 %s26, 1
          %s235 = sand.u32 %s26, 1
          %s236 = smul.addr %s235, 8
          %s237 = scalar_lea.vmem [#allocation2], %s236
          %s238 = smul.addr %s16, 4
          %s239 = scalar_lea.vmem %s0, %s238
          // Predicated region
          $region45: #{tpu_custom_call.1} parent=43 // pred_check
            _
          $region46: #{tpu_custom_call.1} parent=43 // pred_check_branch
            %241 = sbr.rel (0) target = $region48
          $region47: #{tpu_custom_call.1} parent=43 // pred_region
            // Predicated region
            $region49: #{tpu_custom_call.1} parent=47 // pred_check
              _
            $region50: #{tpu_custom_call.1} parent=47 // pred_check_branch
              %243 = sbr.rel target = $region52
            $region51: #{tpu_custom_call.1} parent=47 // pred_region
              // Predicated region
              $region64: #{tpu_custom_call.1} parent=51 // pred_check
                _
              $region65: #{tpu_custom_call.1} parent=51 // pred_check_branch
                %260 = sbr.rel (0) target = $region67
              $region66: #{tpu_custom_call.1} parent=51 // pred_region
                loop: start=0, step=1, limit=1
                $region68: #{tpu_custom_call.1} parent=66 // loop_pre_header
                  _
                $region69: #{tpu_custom_call.1} parent=66 // loop_header
                  %s262 = sphi 0, %s266
                  %p263 = scmp.ge.s32.totalorder %s262, 1
                  %s267 = sphi %s239, %s239
                  %s268 = sphi %s237, %s237
                $region70: #{tpu_custom_call.1} parent=66 // loop_header_branch
                  %265 = sbr.rel (%p263) target = $region74
                $region71: #{tpu_custom_call.1} parent=66 // loop_body
                  _
                $region72: #{tpu_custom_call.1} parent=66 // loop_footer
                  %s266 = sadd.s32 1, %s262
                $region73: #{tpu_custom_call.1} parent=66 // loop_footer_branch
                  %261 = sbr.rel target = $region69
                $region74: #{tpu_custom_call.1} parent=66 // loop_exit
                  _
                loop: start=0, step=1, limit=1
                $region75: #{tpu_custom_call.1} parent=66 // loop_pre_header
                  _
                $region76: #{tpu_custom_call.1} parent=66 // loop_header
                  %s271 = sphi 0, %s275
                  %p272 = scmp.ge.s32.totalorder %s271, 1
                  %s276 = sphi %s239, %s239
                  %s277 = sphi %s237, %s237
                $region77: #{tpu_custom_call.1} parent=66 // loop_header_branch
                  %274 = sbr.rel (%p272) target = $region81
                $region78: #{tpu_custom_call.1} parent=66 // loop_body
                  %v278 = vld [vmem:[%s276] sm:$0xf]
                  %279 = vst [vmem:[%s277] sm:$0xf] %v278
                  %v280 = vld [vmem:[%s276 + $0x8] sm:$0xf]
                  %281 = vst [vmem:[%s277 + $0x4] sm:$0xf] %v280
                $region79: #{tpu_custom_call.1} parent=66 // loop_footer
                  %s275 = sadd.s32 1, %s271
                $region80: #{tpu_custom_call.1} parent=66 // loop_footer_branch
                  %270 = sbr.rel target = $region76
                $region81: #{tpu_custom_call.1} parent=66 // loop_exit
                  _
              $region67: #{tpu_custom_call.1} parent=51 // pred_fallthru
                _
            $region52: #{tpu_custom_call.1} parent=47 // pred_fallthru
              _
            // Predicated region
            $region53: #{tpu_custom_call.1} parent=47 // pred_check
              _
            $region54: #{tpu_custom_call.1} parent=47 // pred_check_branch
              %245 = sbr.rel (0) target = $region56
            $region55: #{tpu_custom_call.1} parent=47 // pred_region
              loop: start=0, step=1, limit=1
              $region57: #{tpu_custom_call.1} parent=55 // loop_pre_header
                _
              $region58: #{tpu_custom_call.1} parent=55 // loop_header
                %s248 = sphi 0, %s252
                %p249 = scmp.ge.s32.totalorder %s248, 1
                %s253 = sphi %s239, %s239
                %s254 = sphi %s237, %s237
              $region59: #{tpu_custom_call.1} parent=55 // loop_header_branch
                %251 = sbr.rel (%p249) target = $region63
              $region60: #{tpu_custom_call.1} parent=55 // loop_body
                %v255 = vld [vmem:[%s253] sm:$0xf]
                %256 = vst [vmem:[%s254] sm:$0xf] %v255
                %v257 = vld [vmem:[%s253 + $0x8] sm:$0xf]
                %258 = vst [vmem:[%s254 + $0x4] sm:$0xf] %v257
              $region61: #{tpu_custom_call.1} parent=55 // loop_footer
                %s252 = sadd.s32 1, %s248
              $region62: #{tpu_custom_call.1} parent=55 // loop_footer_branch
                %247 = sbr.rel target = $region58
              $region63: #{tpu_custom_call.1} parent=55 // loop_exit
                _
            $region56: #{tpu_custom_call.1} parent=47 // pred_fallthru
              _
          $region48: #{tpu_custom_call.1} parent=43 // pred_fallthru
            _
          %282 = vnop
        $region44: #{tpu_custom_call.1} parent=39 // pred_fallthru
          _
      $region40: #{tpu_custom_call.1} parent=5 // pred_fallthru
        _
      %p283 = scmp.le.s32.totalorder 1, %s16
      %p284 = scmp.lt.s32.totalorder %s16, 3
      %p285 = pnand %p283, %p284
      %p286 = pneg %p285
      // Predicated region
      $region82: #{tpu_custom_call.1} parent=5 // pred_check
        _
      $region83: #{tpu_custom_call.1} parent=5 // pred_check_branch
        %288 = sbr.rel (%p285) target = $region85
      $region84: #{tpu_custom_call.1} parent=5 // pred_region
        %s289 = ssub.s32 %s16, 1
        %s290 = sand.u32 %s29, 1
        %s291 = sand.u32 %s29, 1
        %s292 = smul.addr %s291, 8
        %s293 = scalar_lea.vmem [#allocation2], %s292
        // Predicated region
        $region86: #{tpu_custom_call.1} parent=84 // pred_check
          %p294 = pneg %p42
        $region87: #{tpu_custom_call.1} parent=84 // pred_check_branch
          %296 = sbr.rel (%p294) target = $region89
        $region88: #{tpu_custom_call.1} parent=84 // pred_region
          _
        $region89: #{tpu_custom_call.1} parent=84 // pred_fallthru
          _
        %s297 = sand.u32 %s29, 1
        %s298 = sand.u32 %s29, 1
        %s299 = smul.addr %s298, 8
        %s300 = scalar_lea.vmem [#allocation2], %s299
        %p301 = pneg %p42
        %p302 = pneg %p39
        %p303 = pneg %p63
        %p304 = pneg %p60
        %p305 = pneg %p84
        %p306 = pneg %p81
        %p307 = pneg %p105
        %p308 = pneg %p102
        %p309 = pneg %p126
        %p310 = pneg %p123
        %p311 = pneg %p147
        %p312 = pneg %p144
        %p313 = pneg %p168
        %p314 = pneg %p165
        %p315 = pneg %p194
        %p316 = pneg %p191
        %s317 = sand.u32 %s181, 1
        %s318 = scalar_lea.sflag [#allocation4], %s317
        %s319 = sand.u32 %s181, 1
        %s320 = smul.addr %s319, 8
        %s321 = scalar_lea.vmem [#allocation3], %s320
        %v323 = vld [vmem:[%s1] sm:$0xf]
        %v324 = vld [vmem:[%s1 + $0x4] sm:$0xf]
        %v325 = vld [vmem:[%s1 + $0x8] sm:$0xf]
        %v326 = vld [vmem:[%s1 + $0xc] sm:$0xf]
        %v327 = vld [vmem:[%s293] sm:$0xf]
        %v328 = vld [vmem:[%s293 + $0x4] sm:$0xf]
        %v329 = vld [vmem:[%s2] sm:$0xff]
        %v330 = vld [vmem:[%s2 + $0x8] sm:$0xff]
        %v331 = vld [vmem:[%s2 + $0x10] sm:$0xff]
        %v332 = vld [vmem:[%s2 + $0x18] sm:$0xff]
        %334 = vset.pattern.permute.xlu0 0
        %335 = vperm.xlu0 %334, %v329
        %v336 = vpop.permute.xlu0 %335
        %339 = vset.pattern.permute.xlu0 0
        %340 = vperm.xlu0 %339, %v330
        %v341 = vpop.permute.xlu0 %340
        %344 = vset.pattern.permute.xlu0 0
        %345 = vperm.xlu0 %344, %v331
        %v346 = vpop.permute.xlu0 %345
        %349 = vset.pattern.permute.xlu0 0
        %350 = vperm.xlu0 %349, %v332
        %v351 = vpop.permute.xlu0 %350
        %v357 = vunpack.c.l.b16 %v323
        %v358 = vunpack.c.l.b16 %v324
        %v359 = vunpack.c.l.b16 %v325
        %v360 = vunpack.c.l.b16 %v326
        %v361 = vpack.c.b16 %v358, %v357
        %v362 = vpack.c.b16 %v360, %v359
        %v365 = vunpack.c.l.b16 %v327
        %v366 = vunpack.c.l.b16 %v328
        %v367 = vpack.c.b16 %v366, %v365
        %vm369 = vcmask 130048
        %v371 = vsel %vm369, %v361, 0
        %v374 = vsel %vm369, %v362, 0
        %376 = vmatprep.subr.bf16.mxu0 0
        %377 = vmatpush1.bf16.msra.mxu0 %v367
        %378 = vmatprep.subr.bf16.mxu0 0
        %379 = vmatpush1.bf16.msra.mxu0 0
        %380 = vmatprep.subr.bf16.mxu0 0
        %381 = vmatpush1.bf16.msra.mxu0 0
        %382 = vmatprep.subr.bf16.mxu0 0
        %383 = vmatpush1.bf16.msra.mxu0 0
        %384 = vmatprep.subr.bf16.mxu0 0
        %385 = vmatpush1.bf16.msra.mxu0 0
        %386 = vmatprep.subr.bf16.mxu0 0
        %387 = vmatpush1.bf16.msra.mxu0 0
        %388 = vmatprep.subr.bf16.mxu0 0
        %389 = vmatpush1.bf16.msra.mxu0 0
        %390 = vmatprep.subr.bf16.mxu0 0
        %391 = vmatpush1.bf16.msra.mxu0 0
        %392 = vmatprep.subr.bf16.mxu0 0
        %393 = vmatpush1.bf16.msra.mxu0 0
        %394 = vmatprep.subr.bf16.mxu0 0
        %395 = vmatpush1.bf16.msra.mxu0 0
        %396 = vmatprep.subr.bf16.mxu0 0
        %397 = vmatpush1.bf16.msra.mxu0 0
        %398 = vmatprep.subr.bf16.mxu0 0
        %399 = vmatpush1.bf16.msra.mxu0 0
        %400 = vmatprep.subr.bf16.mxu0 0
        %401 = vmatpush1.bf16.msra.mxu0 0
        %402 = vmatprep.subr.bf16.mxu0 0
        %403 = vmatpush1.bf16.msra.mxu0 0
        %404 = vmatprep.subr.bf16.mxu0 0
        %405 = vmatpush1.bf16.msra.mxu0 0
        %406 = vmatprep.subr.bf16.mxu0 0
        %407 = vmatpush1.bf16.msra.mxu0 0
        %408 = vmatprep.mubr.bf16.mxu0 0
        %409 = vmatmul.mubr.bf16.gmra.mrb[0].mxu0 %v371
        %v410 = vpop.f32.mrb[0].mxu0
        %v411 = vadd.f32 %v336, %v410
        %v412 = vpop.f32.mrb[0].mxu0
        %v413 = vpop.f32.mrb[0].mxu0
        %v414 = vadd.f32 %v341, %v413
        %v415 = vpop.f32.mrb[0].mxu0
        %416 = vmatprep.mubr.bf16.mxu0 0
        %417 = vmatmul.mubr.bf16.gmra.mrb[0].mxu0 %v374
        %v418 = vpop.f32.mrb[0].mxu0
        %v419 = vadd.f32 %v346, %v418
        %v420 = vpop.f32.mrb[0].mxu0
        %v421 = vpop.f32.mrb[0].mxu0
        %v422 = vadd.f32 %v351, %v421
        %v423 = vpop.f32.mrb[0].mxu0
        %424 = vdwg.mxu0
        %v425 = vmax.f32 %v411, 0.0
        %v426 = vmax.f32 %v414, 0.0
        %v427 = vmax.f32 %v419, 0.0
        %v428 = vmax.f32 %v422, 0.0
        %v429 = vld [vmem:[%s3] sm:$0xf]
        %v430 = vld [vmem:[%s3 + $0x4] sm:$0xf]
        %v431 = vld [vmem:[%s3 + $0x8] sm:$0xf]
        %v432 = vld [vmem:[%s3 + $0xc] sm:$0xf]
        %v433 = vpack.c.bf16 %v426, %v425
        %v434 = vpack.c.bf16 %v428, %v427
        %v435 = vld [vmem:[%s4] sm:$0xff]
        %v436 = vld [vmem:[%s4 + $0x8] sm:$0xff]
        %v437 = vld [vmem:[%s4 + $0x10] sm:$0xff]
        %v438 = vld [vmem:[%s4 + $0x18] sm:$0xff]
        %440 = vset.pattern.permute.xlu0 0
        %441 = vperm.xlu0 %440, %v435
        %v442 = vpop.permute.xlu0 %441
        %445 = vset.pattern.permute.xlu0 0
        %446 = vperm.xlu0 %445, %v436
        %v447 = vpop.permute.xlu0 %446
        %450 = vset.pattern.permute.xlu0 0
        %451 = vperm.xlu0 %450, %v437
        %v452 = vpop.permute.xlu0 %451
        %455 = vset.pattern.permute.xlu0 0
        %456 = vperm.xlu0 %455, %v438
        %v457 = vpop.permute.xlu0 %456
        %v463 = vunpack.c.l.b16 %v429
        %v464 = vunpack.c.l.b16 %v430
        %v465 = vunpack.c.l.b16 %v431
        %v466 = vunpack.c.l.b16 %v432
        %v467 = vpack.c.b16 %v464, %v463
        %v468 = vpack.c.b16 %v466, %v465
        %vm469 = vcmask 261120
        %v471 = vsel %vm469, %v467, 0
        %v474 = vsel %vm469, %v468, 0
        %476 = vmatprep.subr.bf16.mxu0 0
        %477 = vmatpush1.bf16.msra.mxu0 %v433
        %478 = vmatprep.subr.bf16.mxu0 0
        %479 = vmatpush1.bf16.msra.mxu0 %v434
        %480 = vmatprep.subr.bf16.mxu0 0
        %481 = vmatpush1.bf16.msra.mxu0 0
        %482 = vmatprep.subr.bf16.mxu0 0
        %483 = vmatpush1.bf16.msra.mxu0 0
        %484 = vmatprep.subr.bf16.mxu0 0
        %485 = vmatpush1.bf16.msra.mxu0 0
        %486 = vmatprep.subr.bf16.mxu0 0
        %487 = vmatpush1.bf16.msra.mxu0 0
        %488 = vmatprep.subr.bf16.mxu0 0
        %489 = vmatpush1.bf16.msra.mxu0 0
        %490 = vmatprep.subr.bf16.mxu0 0
        %491 = vmatpush1.bf16.msra.mxu0 0
        %492 = vmatprep.subr.bf16.mxu0 0
        %493 = vmatpush1.bf16.msra.mxu0 0
        %494 = vmatprep.subr.bf16.mxu0 0
        %495 = vmatpush1.bf16.msra.mxu0 0
        %496 = vmatprep.subr.bf16.mxu0 0
        %497 = vmatpush1.bf16.msra.mxu0 0
        %498 = vmatprep.subr.bf16.mxu0 0
        %499 = vmatpush1.bf16.msra.mxu0 0
        %500 = vmatprep.subr.bf16.mxu0 0
        %501 = vmatpush1.bf16.msra.mxu0 0
        %502 = vmatprep.subr.bf16.mxu0 0
        %503 = vmatpush1.bf16.msra.mxu0 0
        %504 = vmatprep.subr.bf16.mxu0 0
        %505 = vmatpush1.bf16.msra.mxu0 0
        %506 = vmatprep.subr.bf16.mxu0 0
        %507 = vmatpush1.bf16.msra.mxu0 0
        %508 = vmatprep.mubr.bf16.mxu0 0
        %509 = vmatmul.mubr.bf16.gmra.mrb[0].mxu0 %v471
        %v510 = vpop.f32.mrb[0].mxu0
        %v511 = vadd.f32 %v442, %v510
        %v512 = vpop.f32.mrb[0].mxu0
        %v513 = vpop.f32.mrb[0].mxu0
        %v514 = vadd.f32 %v447, %v513
        %v515 = vpop.f32.mrb[0].mxu0
        %516 = vmatprep.mubr.bf16.mxu0 0
        %517 = vmatmul.mubr.bf16.gmra.mrb[0].mxu0 %v474
        %v518 = vpop.f32.mrb[0].mxu0
        %v519 = vadd.f32 %v452, %v518
        %v520 = vpop.f32.mrb[0].mxu0
        %v521 = vpop.f32.mrb[0].mxu0
        %v522 = vadd.f32 %v457, %v521
        %v523 = vpop.f32.mrb[0].mxu0
        %524 = vdwg.mxu0
        %v525 = vmax.f32 %v511, 0.0
        %v526 = vmax.f32 %v514, 0.0
        %v527 = vmax.f32 %v519, 0.0
        %v528 = vmax.f32 %v522, 0.0
        %v529 = vld [vmem:[%s5] sm:$0xf]
        %v530 = vpack.c.bf16 %v526, %v525
        %v531 = vpack.c.bf16 %v528, %v527
        %v532 = vld [vmem:[%s6] sm:$0xff]
        %534 = vset.pattern.permute.xlu0 0
        %535 = vperm.xlu0 %534, %v532
        %v536 = vpop.permute.xlu0 %535
        %v539 = vsel %vm469, %v529, 0
        %541 = vmatprep.subr.bf16.mxu0 0
        %542 = vmatpush1.bf16.msra.mxu0 %v530
        %543 = vmatprep.subr.bf16.mxu0 0
        %544 = vmatpush1.bf16.msra.mxu0 %v531
        %545 = vmatprep.subr.bf16.mxu0 0
        %546 = vmatpush1.bf16.msra.mxu0 0
        %547 = vmatprep.subr.bf16.mxu0 0
        %548 = vmatpush1.bf16.msra.mxu0 0
        %549 = vmatprep.subr.bf16.mxu0 0
        %550 = vmatpush1.bf16.msra.mxu0 0
        %551 = vmatprep.subr.bf16.mxu0 0
        %552 = vmatpush1.bf16.msra.mxu0 0
        %553 = vmatprep.subr.bf16.mxu0 0
        %554 = vmatpush1.bf16.msra.mxu0 0
        %555 = vmatprep.subr.bf16.mxu0 0
        %556 = vmatpush1.bf16.msra.mxu0 0
        %557 = vmatprep.subr.bf16.mxu0 0
        %558 = vmatpush1.bf16.msra.mxu0 0
        %559 = vmatprep.subr.bf16.mxu0 0
        %560 = vmatpush1.bf16.msra.mxu0 0
        %561 = vmatprep.subr.bf16.mxu0 0
        %562 = vmatpush1.bf16.msra.mxu0 0
        %563 = vmatprep.subr.bf16.mxu0 0
        %564 = vmatpush1.bf16.msra.mxu0 0
        %565 = vmatprep.subr.bf16.mxu0 0
        %566 = vmatpush1.bf16.msra.mxu0 0
        %567 = vmatprep.subr.bf16.mxu0 0
        %568 = vmatpush1.bf16.msra.mxu0 0
        %569 = vmatprep.subr.bf16.mxu0 0
        %570 = vmatpush1.bf16.msra.mxu0 0
        %571 = vmatprep.subr.bf16.mxu0 0
        %572 = vmatpush1.bf16.msra.mxu0 0
        %573 = vmatprep.mubr.bf16.mxu0 0
        %574 = vmatmul.mubr.bf16.gmra.mrb[0].mxu0 %v539
        %v575 = vpop.f32.mrb[0].mxu0
        %v576 = vadd.f32 %v536, %v575
        %v577 = vpop.f32.mrb[0].mxu0
        %v578 = vpop.f32.mrb[0].mxu0
        %v579 = vpop.f32.mrb[0].mxu0
        %580 = vdwg.mxu0
        %581 = vst [vmem:[%s321] sm:$0xff] %v576
        %s582 = sand.u32 %s181, 1
        %s583 = scalar_lea.sflag [#allocation4], %s582
        %s584 = sand.u32 %s181, 1
        %s585 = smul.addr %s584, 8
        %s586 = scalar_lea.vmem [#allocation3], %s585
        // Predicated region
        $region90: #{tpu_custom_call.1} parent=84 // pred_check
          %p587 = pneg %p191
        $region91: #{tpu_custom_call.1} parent=84 // pred_check_branch
          %589 = sbr.rel (%p587) target = $region93
        $region92: #{tpu_custom_call.1} parent=84 // pred_region
          %s591 = ssub.s32 128, 128
          %592 = vsyncadd %s583, %s591
          %s593 = smul.addr %s21, 128
          %s594 = scalar_lea.hbm %s7, %s593
          %s596 = sshll.u32 %s586, 4
          %s597 = int_to_ptr.vmem [resolvable:$true] %s596
          %599 = dma.vmem_to_hbm [thread:$0]  %s597, 128, %s594, %s583
        $region93: #{tpu_custom_call.1} parent=84 // pred_fallthru
          _
      $region85: #{tpu_custom_call.1} parent=5 // pred_fallthru
        _
      %p600 = scmp.le.s32.totalorder 2, %s16
      // Predicated region
      $region94: #{tpu_custom_call.1} parent=5 // pred_check
        %p601 = pneg %p600
      $region95: #{tpu_custom_call.1} parent=5 // pred_check_branch
        %603 = sbr.rel (%p601) target = $region97
      $region96: #{tpu_custom_call.1} parent=5 // pred_region
        %s604 = ssub.s32 %s16, 2
        // Predicated region
        $region98: #{tpu_custom_call.1} parent=96 // pred_check
          %p605 = pneg %p197
        $region99: #{tpu_custom_call.1} parent=96 // pred_check_branch
          %607 = sbr.rel (%p605) target = $region101
        $region100: #{tpu_custom_call.1} parent=96 // pred_region
          %s608 = sand.u32 %s182, 1
          %s609 = scalar_lea.sflag [#allocation4], %s608
          %s610 = sand.u32 %s182, 1
          %s611 = smul.addr %s610, 8
          %s612 = scalar_lea.vmem [#allocation3], %s611
          %613 = dma.done %s609, 128
        $region101: #{tpu_custom_call.1} parent=96 // pred_fallthru
          _
      $region97: #{tpu_custom_call.1} parent=5 // pred_fallthru
        _
    $region6: #{tpu_custom_call.1} parent=1 // loop_footer
      %s20 = sadd.s32 1, %s16
    $region7: #{tpu_custom_call.1} parent=1 // loop_footer_branch
      %15 = sbr.rel target = $region3
    $region8: #{tpu_custom_call.1} parent=1 // loop_exit
      _
    %614 = vsyncpa [#allocation4], 1
    %s615 = scalar_lea.sflag [#allocation4], 1
    %616 = vsyncpa %s615, 1

</llo_original>
